<compile_context>
chip_gen: v5e
topology: v5e:2x2
jax: 0.10.0
libtpu: 0.0.40
codegen_flags: <defaults>
</compile_context>

<pallas_src>
import functools

import jax
import jax.numpy as jnp
from jax.experimental import pallas as pl
from jax.experimental.pallas import tpu as pltpu


def _prediction_kernel(c_ref, w_ref, o_ref, *, compute_dtype):
    # c_ref: (tm, D_ar)   w_ref: (D_ar, tn)   o_ref: (tm, tn)
    c = c_ref[...]
    if compute_dtype is not None:
        # In-kernel cast: VPU op hidden under the MXU / output DMA; avoids an
        # extra wrapper-side HBM round trip over all of c.
        c = c.astype(compute_dtype)
    o_ref[...] = jnp.dot(
        c, w_ref[...], preferred_element_type=jnp.float32
    ).astype(o_ref.dtype)


def _round_down(x, m):
    return (x // m) * m


def fuse_prediction_weights(weights, compute_dtype=jnp.bfloat16):
    """Hoistable weight relayout: (nPred, D_ar, D_enc) -> (D_ar, D_enc*nPred),
    column order (e, k) so the kernel output reshapes straight to
    (B, S, D_enc, nPred). Optionally cast to the compute dtype once."""
    nPred, D_ar, D_enc = weights.shape
    w = jnp.transpose(weights, (1, 2, 0)).reshape(D_ar, D_enc * nPred)
    if compute_dtype is not None:
        w = w.astype(compute_dtype)
    return w


@functools.partial(
    jax.jit,
    static_argnames=("n_predicts", "tm", "tn", "compute_dtype", "out_dtype",
                     "weight_buffering"),
)
def prediction_network_forward(c, weights, *, n_predicts=None, tm=1024, tn=4096,
                               compute_dtype=jnp.bfloat16,
                               out_dtype=jnp.bfloat16,
                               weight_buffering=None):
    """
    c:       (B, S, dimOutputAR)
    weights: (nPredicts, dimOutputAR, dimOutputEncoder)  -- weights[k] == torch W_k.T
             OR pre-fused (dimOutputAR, dimOutputEncoder*nPredicts) from
             fuse_prediction_weights (then pass n_predicts).
    returns: (B, S, dimOutputEncoder, nPredicts)  -- matches torch.cat(out, 3)

    compute_dtype: dtype the MXU operands are cast to (c cast inside the kernel,
                   weights in the wrapper). None -> keep native dtype (exact).
    out_dtype:     dtype of the (dominant, HBM-writeback-bound) output. None ->
                   c.dtype. Default bf16 halves the dominant HBM write.
    """
    B, S, D_ar = c.shape

    if weights.ndim == 3:
        nPred, D_ar_w, D_enc = weights.shape
        assert D_ar_w == D_ar
        w_all = jnp.transpose(weights, (1, 2, 0)).reshape(D_ar, D_enc * nPred)
    else:
        assert n_predicts is not None, "n_predicts required with pre-fused weights"
        nPred = n_predicts
        D_ar_w, N_w = weights.shape
        assert D_ar_w == D_ar and N_w % nPred == 0
        D_enc = N_w // nPred
        w_all = weights

    N = D_enc * nPred
    BS = B * S

    if compute_dtype is not None:
        w_all = w_all.astype(compute_dtype)     # small slab: wrapper cast is fine
    if out_dtype is None:
        out_dtype = c.dtype

    c_flat = c.reshape(BS, D_ar)                # NOT cast here (cast is in-kernel)

    # ---- tile selection --------------------------------------------------
    tm = max(1, min(tm, BS))
    if BS > 256:
        # Keep several grid steps along tokens so the software pipeline hides
        # the output writeback and megacore (v7x) gets >= 2 blocks.
        min_steps = 4
        cap = _round_down(BS // min_steps, 128)
        if cap >= 128:
            tm = min(tm, cap)
    grid_m = pl.cdiv(BS, tm)

    # Tile the fused column axis only when it is large (keeps weights resident
    # and avoids re-streaming them for typical nPred*D_enc; bounds VMEM on v7x).
    if N > tn and tn % 128 == 0:
        tn_eff = tn
    else:
        tn_eff = N
    grid_n = pl.cdiv(N, tn_eff)

    c_bytes = jnp.dtype(c_flat.dtype).itemsize
    w_bytes = jnp.dtype(w_all.dtype).itemsize
    o_bytes = jnp.dtype(out_dtype).itemsize

    # Explicit scoped-VMEM budget (v5e default ~16 MiB is too small for the
    # intended tiles at production dims). 2x = double buffering.
    vmem_est = (2 * tm * D_ar * c_bytes
                + 2 * D_ar * tn_eff * w_bytes
                + 2 * tm * tn_eff * o_bytes)
    vmem_limit = int(min(64 * 1024 * 1024,
                         max(32 * 1024 * 1024, int(1.5 * vmem_est) + (2 << 20))))

    cost = pl.CostEstimate(
        flops=2 * BS * D_ar * N,
        transcendentals=0,
        bytes_accessed=BS * D_ar * c_bytes + D_ar * N * w_bytes + BS * N * o_bytes,
    )

    w_spec_kwargs = {}
    if weight_buffering is not None:
        # e.g. weight_buffering=1 single-buffers the resident slab (VMEM saver
        # on v7x); off by default for maximum portability.
        w_spec_kwargs["pipeline_mode"] = pl.Buffered(weight_buffering)

    out_flat = pl.pallas_call(
        functools.partial(_prediction_kernel, compute_dtype=compute_dtype),
        out_shape=jax.ShapeDtypeStruct((BS, N), out_dtype),
        grid_spec=pl.GridSpec(
            grid=(grid_n, grid_m),   # n outer: weight block changes once per n-tile
            in_specs=[
                pl.BlockSpec((tm, D_ar), lambda n, m: (m, 0)),        # streamed tokens
                pl.BlockSpec((D_ar, tn_eff), lambda n, m: (0, n),      # (near-)resident weights
                             **w_spec_kwargs),
            ],
            out_specs=pl.BlockSpec((tm, tn_eff), lambda n, m: (m, n)),
        ),
        compiler_params=pltpu.CompilerParams(
            dimension_semantics=("parallel", "parallel"),
            vmem_limit_bytes=vmem_limit,
        ),
        cost_estimate=cost,
    )(c_flat, w_all)

    # Column order was chosen so no transpose is needed here.
    return out_flat.reshape(B, S, D_enc, nPred)


def init_prediction_weights(key, nPredicts, dimOutputAR, dimOutputEncoder,
                            residual_std=0.01):
    """Deterministic synthetic init mimicking the module's __init__:
    W_k = cat([randn(dimAR, dimAR), residual_std * randn(residual, dimAR)], 0)
    (shape (dimEnc, dimAR)); we store its transpose for the kernel."""
    ws = []
    for k in range(nPredicts):
        k1, k2, key = jax.random.split(jax.random.fold_in(key, k), 3)
        top = jax.random.normal(k1, (dimOutputAR, dimOutputAR), jnp.float32)
        if dimOutputEncoder > dimOutputAR:
            residual = dimOutputEncoder - dimOutputAR
            bot = residual_std * jax.random.normal(
                k2, (residual, dimOutputAR), jnp.float32)
            w = jnp.concatenate([top, bot], axis=0)        # (dimEnc, dimAR)
        else:
            w = top[:dimOutputEncoder]                     # (dimEnc, dimAR)
        ws.append(w.T)                                     # (dimAR, dimEnc)
    return jnp.stack(ws, axis=0)                           # (nPred, dimAR, dimEnc)


def reference_forward(c, weights):
    # pure-JAX reference: out[..., k] = c @ weights[k]
    return jnp.einsum("bsa,kae->bsek", c, weights)


if __name__ == "__main__":
    # --- config 1: small shapes consistent with the module's forward --------
    B, S = 2, 8
    nPredicts = 4
    dimOutputAR = 32
    dimOutputEncoder = 48   # > dimOutputAR -> exercises the residual init path

    key = jax.random.PRNGKey(0)
    kc, kw = jax.random.split(key)
    c = jax.random.normal(kc, (B, S, dimOutputAR), jnp.float32)
    weights = init_prediction_weights(kw, nPredicts, dimOutputAR, dimOutputEncoder)
    ref = reference_forward(c, weights)

    # Default fast path: bf16 compute (cast inside the kernel) + bf16 output.
    out_bf16 = jax.block_until_ready(prediction_network_forward(c, weights))
    assert out_bf16.shape == (B, S, dimOutputEncoder, nPredicts), out_bf16.shape
    assert out_bf16.dtype == jnp.bfloat16
    assert jnp.allclose(out_bf16.astype(jnp.float32), ref, atol=2e-1, rtol=5e-2), \
        "bf16 path mismatch vs reference"

    # Exact f32 path (matches the PyTorch module's numerics).
    out_f32 = jax.block_until_ready(
        prediction_network_forward(c, weights,
                                   compute_dtype=None, out_dtype=jnp.float32))
    assert out_f32.dtype == jnp.float32
    assert jnp.allclose(out_f32, ref, atol=1e-4, rtol=1e-4), \
        "f32 path mismatch vs reference"

    # Pre-fused (hoisted relayout + cast) weights give the same result.
    w_fused = fuse_prediction_weights(weights)  # (D_ar, D_enc*nPred), bf16
    out_fused = jax.block_until_ready(
        prediction_network_forward(c, w_fused, n_predicts=nPredicts))
    assert jnp.allclose(out_fused.astype(jnp.float32), ref, atol=2e-1, rtol=5e-2)

    # --- config 2: exercise the 2-D (n, m) tiled grid path ------------------
    dimEnc2, nPred2 = 64, 4                      # N = 256 -> two 128-wide n-tiles
    kw2 = jax.random.fold_in(key, 123)
    weights2 = init_prediction_weights(kw2, nPred2, dimOutputAR, dimEnc2)
    ref2 = reference_forward(c, weights2)
    out2 = jax.block_until_ready(
        prediction_network_forward(c, weights2, tm=8, tn=128,
                                   compute_dtype=None, out_dtype=jnp.float32))
    assert out2.shape == (B, S, dimEnc2, nPred2)
    assert jnp.allclose(out2, ref2, atol=1e-4, rtol=1e-4), \
        "tiled (n,m) grid path mismatch vs reference"

    # TODO(synk): rnnMode in {'RNN','LSTM','ffd','conv*','transformer','none'}
    # predictor branches and the dropout=True path have no clean single-kernel
    # Pallas equivalent; only the default bias-free Linear path is implemented.
    print("KERNEL_OK")
</pallas_src>

<mosaic_0001>
module attributes {stable_mosaic.version = 11 : i64} {
  func.func @_prediction_kernel(%arg0: i32, %arg1: i32, %arg2: memref<16x32xf32, #tpu.memory_space<vmem>>, %arg3: memref<32x192xbf16, #tpu.memory_space<vmem>>, %arg4: memref<16x192xbf16, #tpu.memory_space<vmem>>) attributes {dimension_semantics = [#tpu.dimension_semantics<parallel>, #tpu.dimension_semantics<parallel>], iteration_bounds = array<i64: 1, 1>, scalar_prefetch = 0 : i64, scratch_operands = 0 : i64, tpu.core_type = #tpu.core_type<tc>, window_params = [{transform_indices = @transform_0, window_bounds = array<i64: 16, 32>}, {transform_indices = @transform_1, window_bounds = array<i64: 32, 192>}, {transform_indices = @transform_2, window_bounds = array<i64: 16, 192>}]} {
    %c0 = arith.constant 0 : index
    %c0_0 = arith.constant 0 : index
    %0 = vector.load %arg2[%c0, %c0_0] : memref<16x32xf32, #tpu.memory_space<vmem>>, vector<16x32xf32>
    %1 = arith.truncf %0 : vector<16x32xf32> to vector<16x32xbf16>
    %c0_1 = arith.constant 0 : index
    %c0_2 = arith.constant 0 : index
    %2 = vector.load %arg3[%c0_1, %c0_2] : memref<32x192xbf16, #tpu.memory_space<vmem>>, vector<32x192xbf16>
    %cst = arith.constant dense<0.000000e+00> : vector<16x192xf32>
    %3 = tpu.matmul %1, %2, %cst {dimension_numbers = #tpu.dot_dimension_numbers<[1], [0], [0], [1], [0, 0, 1, 1], [], []>} : vector<16x32xbf16>, vector<32x192xbf16>, vector<16x192xf32> -> vector<16x192xf32>
    %4 = arith.truncf %3 : vector<16x192xf32> to vector<16x192xbf16>
    %c0_3 = arith.constant 0 : index
    %c0_4 = arith.constant 0 : index
    %5 = vector.load %arg4[%c0_3, %c0_4] : memref<16x192xbf16, #tpu.memory_space<vmem>>, vector<16x192xbf16>
    tpu.vector_store %arg4[%c0_3, %c0_4], %4 {strides = array<i32>} : memref<16x192xbf16, #tpu.memory_space<vmem>>, vector<16x192xbf16>,
    return
  }
  func.func @transform_0(%arg0: i32, %arg1: i32) -> (i32, i32) {
    %c0_i32 = arith.constant 0 : i32
    %c0_i32_0 = arith.constant 0 : i32
    return %arg1, %c0_i32 : i32, i32
  }
  func.func @transform_1(%arg0: i32, %arg1: i32) -> (i32, i32) {
    %c0_i32 = arith.constant 0 : i32
    %c0_i32_0 = arith.constant 0 : i32
    return %c0_i32, %arg0 : i32, i32
  }
  func.func @transform_2(%arg0: i32, %arg1: i32) -> (i32, i32) {
    %c0_i32 = arith.constant 0 : i32
    return %arg1, %arg0 : i32, i32
  }
}

</mosaic_0001>

<llo_original>
// kernel: prediction_network_forward.1
$region0: #{prediction_network_forward.1}
  #allocation0 [shape = 'u32[]', space=smem, size = 0x4, offset = 0x4, fixed_abs, tag = 'smem constant byte address 0x4 - core index']
  #allocation1 [shape = 'u32[72,128]{1,0:T(1,128)}', space=vmem, size = 0x9000, scoped, tag = 'internal scratch']
  %s0 = inlined_call_operand.vmem [shape: f32[16,32], index: 0, kind: input, shape index: {}]
  %s1 = inlined_call_operand.vmem [shape: bf16[32,192], index: 1, kind: input, shape index: {}]
  %s2 = inlined_call_operand.vmem [shape: bf16[16,192], index: 2, kind: output, shape index: {}]
  %s3 = sld [smem:[#allocation0]]
  $region18: #{prediction_network_forward.1} parent=0
    _
  %s5 = ssub.s32 1, %s3
  %s6 = scalar_select 0, %s5, %s3
  // Predicated region
  $region2: #{prediction_network_forward.1} parent=0 // pred_check
    _
  $region3: #{prediction_network_forward.1} parent=0 // pred_check_branch
    %8 = sbr.rel (0) target = $region5
  $region4: #{prediction_network_forward.1} parent=0 // pred_region
    _
  $region5: #{prediction_network_forward.1} parent=0 // pred_fallthru
    _
  // Predicated region
  $region6: #{prediction_network_forward.1} parent=0 // pred_check
    _
  $region7: #{prediction_network_forward.1} parent=0 // pred_check_branch
    %10 = sbr.rel (0) target = $region9
  $region8: #{prediction_network_forward.1} parent=0 // pred_region
    _
  $region9: #{prediction_network_forward.1} parent=0 // pred_fallthru
    _
  %v12 = vld [vmem:[%s0] sm:$0xff]
  %v13 = vld [vmem:[%s0 + $0x8] sm:$0xff]
  %v14 = vpack.c.bf16 %v13, %v12
  %v15 = vld [vmem:[%s1] sm:$0xff]
  %v16 = vld [vmem:[%s1 + $0x8] sm:$0xff]
  %v17 = vld [vmem:[%s1 + $0x10] sm:$0xff]
  %v18 = vld [vmem:[%s1 + $0x18] sm:$0xff]
  %v23 = vunpack.c.l.b16 %v15
  %v24 = vunpack.c.h.b16 %v15
  %v25 = vunpack.c.l.b16 %v16
  %v26 = vunpack.c.h.b16 %v16
  %v27 = vunpack.c.l.b16 %v17
  %v28 = vunpack.c.h.b16 %v17
  %v29 = vunpack.c.l.b16 %v18
  %v30 = vunpack.c.h.b16 %v18
  %v31 = vpack.c.b16 %v25, %v23
  %v32 = vpack.c.b16 %v26, %v24
  %v33 = vpack.c.b16 %v29, %v27
  %v34 = vpack.c.b16 %v30, %v28
  %vm39 = vcmask 261120
  %v41 = vsel %vm39, %v14, 0
  %43 = vmatpush.bf16.msra.mxu0 0
  %44 = vmatpush.bf16.msra.mxu0 0
  %45 = vmatpush.bf16.msra.mxu0 0
  %46 = vmatpush.bf16.msra.mxu0 0
  %47 = vmatpush.bf16.msra.mxu0 0
  %48 = vmatpush.bf16.msra.mxu0 0
  %49 = vmatpush.bf16.msra.mxu0 %v33
  %50 = vmatpush.bf16.msra.mxu0 %v31
  %51 = vmatmul.bf16.gmra.mxu0 %v41
  %v52 = vpop.f32.mrf.mxu0
  %v53 = vadd.f32 0.0, %v52
  %v54 = vpop.f32.mrf.mxu0
  %v55 = vadd.f32 0.0, %v54
  %56 = vdwg.mxu0
  %57 = vmatpush.bf16.msra.mxu0 0
  %58 = vmatpush.bf16.msra.mxu0 0
  %59 = vmatpush.bf16.msra.mxu0 0
  %60 = vmatpush.bf16.msra.mxu0 0
  %61 = vmatpush.bf16.msra.mxu0 0
  %62 = vmatpush.bf16.msra.mxu0 0
  %63 = vmatpush.bf16.msra.mxu0 %v34
  %64 = vmatpush.bf16.msra.mxu0 %v32
  %65 = vmatmul.bf16.gmra.mxu0 %v41
  %v66 = vpop.f32.mrf.mxu0
  %v67 = vadd.f32 0.0, %v66
  %v68 = vpop.f32.mrf.mxu0
  %v69 = vadd.f32 0.0, %v68
  %70 = vdwg.mxu0
  %v71 = vpack.c.bf16 %v67, %v53
  %v72 = vpack.c.bf16 %v69, %v55
  %vm73 = vcmask 1043456
  %vm74 = vcmask 523268
  %vm75 = vmor %vm74, %vm73
  %76 = vst.msk [vmem:[%s2] sm:$0xff] %vm75, %v71
  %77 = vst.msk [vmem:[%s2 + $0x8] sm:$0xff] %vm75, %v72
  // Predicated region
  $region10: #{prediction_network_forward.1} parent=0 // pred_check
    _
  $region11: #{prediction_network_forward.1} parent=0 // pred_check_branch
    %79 = sbr.rel (0) target = $region13
  $region12: #{prediction_network_forward.1} parent=0 // pred_region
    _
  $region13: #{prediction_network_forward.1} parent=0 // pred_fallthru
    _
  // Predicated region
  $region14: #{prediction_network_forward.1} parent=0 // pred_check
    _
  $region15: #{prediction_network_forward.1} parent=0 // pred_check_branch
    %81 = sbr.rel (0) target = $region17
  $region16: #{prediction_network_forward.1} parent=0 // pred_region
    _
  $region17: #{prediction_network_forward.1} parent=0 // pred_fallthru
    _

</llo_original>
